<compile_context>
chip_gen: v7x
topology: tpu7x:2x2x1
jax: 0.10.0
libtpu: 0.0.40
codegen_flags: <defaults>
</compile_context>

<pallas_src>
import functools

import jax
import jax.numpy as jnp
from jax.experimental import pallas as pl
from jax.experimental.pallas import tpu as pltpu


# ----------------------------------------------------------------------------
# Kernel: per-(batch, C-tile, W-tile) partial sums over H.
# ----------------------------------------------------------------------------
def _depth_partials_kernel(pred_ref, depth_ref, s_ref, q_ref):
    # pred_ref / depth_ref: (tile_c, tile_h, tile_w) tile (batch dim squeezed).
    # s_ref, q_ref:         (tile_c, tile_w) f32 output blocks, resident across
    #                       the h grid axis (same block index for every h).
    h = pl.program_id(3)

    @pl.when(h == 0)
    def _():
        s_ref[...] = jnp.zeros_like(s_ref)
        q_ref[...] = jnp.zeros_like(q_ref)

    # Upcast before the subtraction so bf16/fp16 inputs match an f32 baseline.
    e = jnp.abs(pred_ref[...].astype(jnp.float32)
                - depth_ref[...].astype(jnp.float32))          # (tc, th, tw)

    # Single fused H-axis reduce per tile, accumulated into the resident blocks.
    s_ref[...] += jnp.sum(e, axis=1)       # running sum_H |e|   -> (tc, tw)
    q_ref[...] += jnp.sum(e * e, axis=1)   # running sum_H e^2   -> (tc, tw)


# ----------------------------------------------------------------------------
# Tiling / VMEM helpers.
# ----------------------------------------------------------------------------
def _vmem_capacity_bytes():
    """Per-core VMEM capacity; conservative 64 MiB (v7x) fallback."""
    try:
        info = pltpu.get_tpu_info()
        cap = getattr(info, "vmem_capacity_bytes", None)
        if cap:
            return int(cap)
    except Exception:
        pass
    return 64 * 1024 * 1024


def _legal_divisor_tiles(dim, align):
    """Legal block sizes for `dim`: the full dim, plus multiples of `align`
    that divide `dim` exactly (exact division so no padded garbage enters the
    reductions).  Returned largest-first."""
    tiles = {dim}
    if dim % align == 0:
        for t in range(align, dim, align):
            if dim % t == 0:
                tiles.add(t)
    return sorted(tiles, reverse=True)


def _choose_tiles(B, C, H, W, itemsize, budget_bytes, chunk_min_bytes=256 * 1024):
    """Pick (tile_c, tile_h, tile_w) so the double-buffered input footprint
    (2 inputs x 2 buffers x tile) fits `budget_bytes`, preferring shapes that
    keep per-channel DMA chunks contiguous and large."""
    align_h = 8 * max(1, 4 // itemsize)          # 8 f32, 16 bf16, 32 int8/fp8
    legal_h = _legal_divisor_tiles(H, align_h)
    legal_w = _legal_divisor_tiles(W, 128)
    legal_c = _legal_divisor_tiles(C, 8)          # outputs are f32: sublane = 8

    def fits(tc, th, tw):
        return 4 * tc * th * tw * itemsize <= budget_bytes

    def base_tiles():
        # Contiguity floor for the H tile: keep each per-channel DMA chunk
        # (tile_h * W * itemsize contiguous bytes in NCHW) >= chunk_min when
        # a legal tile_h allows it.
        floor_h = min(legal_h)
        for th in sorted(legal_h):
            if th * W * itemsize >= chunk_min_bytes:
                floor_h = th
                break
        # Phase 1: full C, full W, shrink H (not below the contiguity floor).
        for th in legal_h:
            if th < floor_h:
                break
            if fits(C, th, W):
                return C, th, W
        # Phase 2: hold H at the floor, full W, shrink C (keeps chunks big).
        for tc in legal_c:
            if fits(tc, floor_h, W):
                return tc, floor_h, W
        # Phase 3: smallest C, full W, shrink H below the floor.
        tc = min(legal_c)
        for th in legal_h:
            if fits(tc, th, W):
                return tc, th, W
        # Phase 4: last resort — shrink W (rows become strided).
        th = min(legal_h)
        for tw in legal_w:
            if fits(tc, th, tw):
                return tc, th, tw
        raise ValueError(
            f"depth_loss: no legal tiling of a (C={C}, H={H}, W={W}) x {itemsize}B "
            f"image fits the {budget_bytes}-byte VMEM input budget; smallest legal "
            f"block is (C={min(legal_c)}, H={min(legal_h)}, W={min(legal_w)}). "
            f"Pad H to a multiple of {align_h}, W to a multiple of 128, or C to a "
            f"multiple of 8 so smaller blocks become legal.")

    tc, th, tw = base_tiles()

    # Megacore (v7x has 2 TensorCores): if there is only one parallel
    # (b, c-tile, w-tile) slab, split C (contiguity-friendly) or W to get 2+.
    if B * (C // tc) * (W // tw) < 2:
        c_splits = [c for c in legal_c if c < tc]
        w_splits = [w for w in legal_w if w < tw]
        if c_splits:
            tc = c_splits[0]
        elif w_splits:
            tw = w_splits[0]
    return tc, th, tw


def _validate_tile(name, t, dim, align):
    if t == dim:
        return
    if not (isinstance(t, int) and 0 < t < dim and dim % t == 0 and t % align == 0):
        raise ValueError(
            f"depth_loss: {name}={t} is illegal for dim={dim}: it must equal the "
            f"full dim, or be a multiple of {align} that divides {dim} exactly.")


# ----------------------------------------------------------------------------
# Public entry point.
# ----------------------------------------------------------------------------
def depth_loss(predict, actual_depth, *, tile_c=None, tile_h=None, tile_w=None):
    """predict, actual_depth: (B, C, H, W) arrays. Returns (C, W) float32."""
    B, C, H, W = predict.shape
    assert actual_depth.shape == predict.shape

    itemsize = jnp.dtype(predict.dtype).itemsize
    align_h = 8 * max(1, 4 // itemsize)

    vmem_cap = _vmem_capacity_bytes()
    # Input budget: past the ~4 MiB/step roofline knee; leave room for outputs,
    # Mosaic internal scratch and surrounding fusions on 64 MiB parts.
    budget = min(24 * 1024 * 1024, vmem_cap // 3)

    auto_c, auto_h, auto_w = _choose_tiles(B, C, H, W, itemsize, budget)
    tile_c = auto_c if tile_c is None else tile_c
    tile_h = auto_h if tile_h is None else tile_h
    tile_w = auto_w if tile_w is None else tile_w

    _validate_tile("tile_c", tile_c, C, 8)
    _validate_tile("tile_h", tile_h, H, align_h)
    _validate_tile("tile_w", tile_w, W, 128)

    n_c, n_w, n_h = C // tile_c, W // tile_w, H // tile_h

    # Footprint-derived VMEM limit: 2 inputs + 2 f32 outputs, double-buffered,
    # plus headroom for Mosaic internals.  Never below the 32 MiB scoped
    # default, never above the physical per-core capacity.
    inp_bytes = 2 * 2 * tile_c * tile_h * tile_w * itemsize
    out_bytes = 2 * 2 * tile_c * tile_w * 4
    if inp_bytes + out_bytes > vmem_cap - (4 << 20):
        raise ValueError(
            f"depth_loss: tile (C={tile_c}, H={tile_h}, W={tile_w}) needs "
            f"{inp_bytes + out_bytes} bytes of double-buffered VMEM, which does not "
            f"fit the {vmem_cap}-byte VMEM capacity; choose smaller tiles.")
    vmem_limit = int(min(vmem_cap, max(32 << 20, inp_bytes + out_bytes + (8 << 20))))

    in_spec = pl.BlockSpec((pl.Squeezed(), tile_c, tile_h, tile_w),
                           lambda b, c, w, h: (b, c, h, w))
    out_spec = pl.BlockSpec((pl.Squeezed(), tile_c, tile_w),
                            lambda b, c, w, h: (b, c, w))

    s, q = pl.pallas_call(
        _depth_partials_kernel,
        out_shape=(jax.ShapeDtypeStruct((B, C, W), jnp.float32),   # s = sum_H |e|
                   jax.ShapeDtypeStruct((B, C, W), jnp.float32)),  # q = sum_H e^2
        grid_spec=pltpu.PrefetchScalarGridSpec(
            num_scalar_prefetch=0,
            grid=(B, n_c, n_w, n_h),
            in_specs=[in_spec, in_spec],
            out_specs=(out_spec, out_spec),
        ),
        compiler_params=pltpu.CompilerParams(
            # (B, C-tile, W-tile) slabs are independent -> megacore-shardable;
            # the H-tile axis carries the resident output accumulators.
            dimension_semantics=("parallel", "parallel", "parallel", "arbitrary"),
            vmem_limit_bytes=vmem_limit,
        ),
    )(predict, actual_depth)

    # Tiny (B, C, W) finalize in the wrapper (H-times smaller than the inputs).
    term_1 = jnp.sum(q, axis=(1, 2)) * (1.0 / H)                       # (B,)
    term_2 = s * s * (1.0 / (2.0 * float(H * W) ** 2))                 # (B, C, W)
    return jnp.sum(term_1[:, None, None] - term_2, axis=0)             # (C, W)


# ----------------------------------------------------------------------------
# Pure-JAX reference mirroring the PyTorch module line by line.
# ----------------------------------------------------------------------------
def _depth_loss_ref(predict, actual_depth):
    H, W = predict.shape[2], predict.shape[3]
    e = jnp.abs(predict.astype(jnp.float32) - actual_depth.astype(jnp.float32))
    term_1 = jnp.sum(e ** 2, axis=(1, 2, 3)) / H                   # (B,)
    term_2 = jnp.sum(e, axis=2) ** 2 / (2.0 * float(H * W) ** 2)   # (B, C, W)
    per_b = term_1[:, None, None] - term_2                         # (B, C, W)
    return jnp.sum(per_b, axis=0)                                  # (C, W)


if __name__ == "__main__":
    key = jax.random.PRNGKey(0)
    k1, k2, k3, k4, k5, k6 = jax.random.split(key, 6)

    # Test 1: small canonical shape, auto-chosen tiles (single H tile).
    B, C, H, W = 2, 4, 16, 16
    predict = jax.random.normal(k1, (B, C, H, W), dtype=jnp.float32)
    actual_depth = jax.random.normal(k2, (B, C, H, W), dtype=jnp.float32)

    out = jax.block_until_ready(depth_loss(predict, actual_depth))
    ref = _depth_loss_ref(predict, actual_depth)
    assert out.shape == (C, W)
    assert jnp.allclose(out, ref, rtol=1e-5, atol=1e-5), (
        f"mismatch (auto tiles): max abs err {jnp.max(jnp.abs(out - ref))}")

    # Test 2: exercise the multi-H-tile accumulation path (tile_h < H).
    B2, C2, H2, W2 = 2, 4, 32, 16
    p2 = jax.random.normal(k3, (B2, C2, H2, W2), dtype=jnp.float32)
    d2 = jax.random.normal(k4, (B2, C2, H2, W2), dtype=jnp.float32)

    out2 = jax.block_until_ready(depth_loss(p2, d2, tile_h=8))
    ref2 = _depth_loss_ref(p2, d2)
    assert out2.shape == (C2, W2)
    assert jnp.allclose(out2, ref2, rtol=1e-5, atol=1e-5), (
        f"mismatch (H-tiled): max abs err {jnp.max(jnp.abs(out2 - ref2))}")

    # Test 3: B == 1 with C/W/H all tiled (exercises the parallel C/W axes
    # that keep both v7x TensorCores busy).
    B3, C3, H3, W3 = 1, 16, 16, 256
    p3 = jax.random.normal(k5, (B3, C3, H3, W3), dtype=jnp.float32)
    d3 = jax.random.normal(k6, (B3, C3, H3, W3), dtype=jnp.float32)

    out3 = jax.block_until_ready(depth_loss(p3, d3, tile_c=8, tile_h=8, tile_w=128))
    ref3 = _depth_loss_ref(p3, d3)
    assert out3.shape == (C3, W3)
    assert jnp.allclose(out3, ref3, rtol=1e-5, atol=1e-5), (
        f"mismatch (C/W/H-tiled): max abs err {jnp.max(jnp.abs(out3 - ref3))}")

    print("KERNEL_OK")
</pallas_src>

<mosaic_0001>
module attributes {stable_mosaic.version = 11 : i64} {
  func.func @_depth_partials_kernel(%arg0: i32, %arg1: i32, %arg2: i32, %arg3: i32, %arg4: memref<1x4x16x16xf32, #tpu.memory_space<vmem>>, %arg5: memref<1x4x16x16xf32, #tpu.memory_space<vmem>>, %arg6: memref<1x4x16xf32, #tpu.memory_space<vmem>>, %arg7: memref<1x4x16xf32, #tpu.memory_space<vmem>>) attributes {dimension_semantics = [#tpu.dimension_semantics<parallel>, #tpu.dimension_semantics<parallel>, #tpu.dimension_semantics<parallel>, #tpu.dimension_semantics<arbitrary>], iteration_bounds = array<i64: 2, 1, 1, 1>, scalar_prefetch = 0 : i64, scratch_operands = 0 : i64, tpu.core_type = #tpu.core_type<tc>, window_params = [{transform_indices = @transform_0, window_bounds = array<i64: 1, 4, 16, 16>}, {transform_indices = @transform_1, window_bounds = array<i64: 1, 4, 16, 16>}, {transform_indices = @transform_2, window_bounds = array<i64: 1, 4, 16>}, {transform_indices = @transform_3, window_bounds = array<i64: 1, 4, 16>}]} {
    %c0_i32 = arith.constant 0 : i32
    %0 = arith.cmpi eq, %arg3, %c0_i32 : i32
    %1 = arith.extui %0 : i1 to i32
    %c0_i32_0 = arith.constant 0 : i32
    %2 = arith.cmpi ne, %1, %c0_i32_0 : i32
    scf.if %2 {
      %cst_21 = arith.constant 0.000000e+00 : f32
      %24 = vector.broadcast %cst_21 : f32 to vector<4x16xf32>
      %c0_22 = arith.constant 0 : index
      %c0_23 = arith.constant 0 : index
      %c0_24 = arith.constant 0 : index
      %25 = vector.load %arg6[%c0_22, %c0_23, %c0_24] : memref<1x4x16xf32, #tpu.memory_space<vmem>>, vector<1x4x16xf32>
      %26 = vector.shape_cast %25 : vector<1x4x16xf32> to vector<4x16xf32>
      %27 = vector.shape_cast %24 : vector<4x16xf32> to vector<1x4x16xf32>
      tpu.vector_store %arg6[%c0_22, %c0_23, %c0_24], %27 {strides = array<i32>} : memref<1x4x16xf32, #tpu.memory_space<vmem>>, vector<1x4x16xf32>,
      %cst_25 = arith.constant 0.000000e+00 : f32
      %28 = vector.broadcast %cst_25 : f32 to vector<4x16xf32>
      %c0_26 = arith.constant 0 : index
      %c0_27 = arith.constant 0 : index
      %c0_28 = arith.constant 0 : index
      %29 = vector.load %arg7[%c0_26, %c0_27, %c0_28] : memref<1x4x16xf32, #tpu.memory_space<vmem>>, vector<1x4x16xf32>
      %30 = vector.shape_cast %29 : vector<1x4x16xf32> to vector<4x16xf32>
      %31 = vector.shape_cast %28 : vector<4x16xf32> to vector<1x4x16xf32>
      tpu.vector_store %arg7[%c0_26, %c0_27, %c0_28], %31 {strides = array<i32>} : memref<1x4x16xf32, #tpu.memory_space<vmem>>, vector<1x4x16xf32>,
    } else {
    }
    %c0 = arith.constant 0 : index
    %c0_1 = arith.constant 0 : index
    %c0_2 = arith.constant 0 : index
    %c0_3 = arith.constant 0 : index
    %3 = vector.load %arg4[%c0, %c0_1, %c0_2, %c0_3] : memref<1x4x16x16xf32, #tpu.memory_space<vmem>>, vector<1x4x16x16xf32>
    %4 = vector.shape_cast %3 : vector<1x4x16x16xf32> to vector<4x16x16xf32>
    %c0_4 = arith.constant 0 : index
    %c0_5 = arith.constant 0 : index
    %c0_6 = arith.constant 0 : index
    %c0_7 = arith.constant 0 : index
    %5 = vector.load %arg5[%c0_4, %c0_5, %c0_6, %c0_7] : memref<1x4x16x16xf32, #tpu.memory_space<vmem>>, vector<1x4x16x16xf32>
    %6 = vector.shape_cast %5 : vector<1x4x16x16xf32> to vector<4x16x16xf32>
    %7 = arith.subf %4, %6 : vector<4x16x16xf32>
    %8 = math.absf %7 : vector<4x16x16xf32>
    %c0_8 = arith.constant 0 : index
    %c0_9 = arith.constant 0 : index
    %c0_10 = arith.constant 0 : index
    %9 = vector.load %arg6[%c0_8, %c0_9, %c0_10] : memref<1x4x16xf32, #tpu.memory_space<vmem>>, vector<1x4x16xf32>
    %10 = vector.shape_cast %9 : vector<1x4x16xf32> to vector<4x16xf32>
    %cst = arith.constant dense<0.000000e+00> : vector<4x16xf32>
    %11 = vector.multi_reduction <add>, %8, %cst [1] : vector<4x16x16xf32> to vector<4x16xf32>
    %12 = arith.addf %10, %11 : vector<4x16xf32>
    %c0_11 = arith.constant 0 : index
    %c0_12 = arith.constant 0 : index
    %c0_13 = arith.constant 0 : index
    %13 = vector.load %arg6[%c0_11, %c0_12, %c0_13] : memref<1x4x16xf32, #tpu.memory_space<vmem>>, vector<1x4x16xf32>
    %14 = vector.shape_cast %13 : vector<1x4x16xf32> to vector<4x16xf32>
    %15 = vector.shape_cast %12 : vector<4x16xf32> to vector<1x4x16xf32>
    tpu.vector_store %arg6[%c0_11, %c0_12, %c0_13], %15 {strides = array<i32>} : memref<1x4x16xf32, #tpu.memory_space<vmem>>, vector<1x4x16xf32>,
    %c0_14 = arith.constant 0 : index
    %c0_15 = arith.constant 0 : index
    %c0_16 = arith.constant 0 : index
    %16 = vector.load %arg7[%c0_14, %c0_15, %c0_16] : memref<1x4x16xf32, #tpu.memory_space<vmem>>, vector<1x4x16xf32>
    %17 = vector.shape_cast %16 : vector<1x4x16xf32> to vector<4x16xf32>
    %18 = arith.mulf %8, %8 : vector<4x16x16xf32>
    %cst_17 = arith.constant dense<0.000000e+00> : vector<4x16xf32>
    %19 = vector.multi_reduction <add>, %18, %cst_17 [1] : vector<4x16x16xf32> to vector<4x16xf32>
    %20 = arith.addf %17, %19 : vector<4x16xf32>
    %c0_18 = arith.constant 0 : index
    %c0_19 = arith.constant 0 : index
    %c0_20 = arith.constant 0 : index
    %21 = vector.load %arg7[%c0_18, %c0_19, %c0_20] : memref<1x4x16xf32, #tpu.memory_space<vmem>>, vector<1x4x16xf32>
    %22 = vector.shape_cast %21 : vector<1x4x16xf32> to vector<4x16xf32>
    %23 = vector.shape_cast %20 : vector<4x16xf32> to vector<1x4x16xf32>
    tpu.vector_store %arg7[%c0_18, %c0_19, %c0_20], %23 {strides = array<i32>} : memref<1x4x16xf32, #tpu.memory_space<vmem>>, vector<1x4x16xf32>,
    return
  }
  func.func @transform_0(%arg0: i32, %arg1: i32, %arg2: i32, %arg3: i32) -> (i32, i32, i32, i32) {
    %c0_i32 = arith.constant 0 : i32
    return %arg0, %arg1, %arg3, %arg2 : i32, i32, i32, i32
  }
  func.func @transform_1(%arg0: i32, %arg1: i32, %arg2: i32, %arg3: i32) -> (i32, i32, i32, i32) {
    %c0_i32 = arith.constant 0 : i32
    return %arg0, %arg1, %arg3, %arg2 : i32, i32, i32, i32
  }
  func.func @transform_2(%arg0: i32, %arg1: i32, %arg2: i32, %arg3: i32) -> (i32, i32, i32) {
    %c0_i32 = arith.constant 0 : i32
    return %arg0, %arg1, %arg2 : i32, i32, i32
  }
  func.func @transform_3(%arg0: i32, %arg1: i32, %arg2: i32, %arg3: i32) -> (i32, i32, i32) {
    %c0_i32 = arith.constant 0 : i32
    return %arg0, %arg1, %arg2 : i32, i32, i32
  }
}

</mosaic_0001>

<llo_original>
// kernel: tpu_custom_call.1
$region0: #{tpu_custom_call.1}
  #allocation0 [shape = 'u32[]', space=smem, size = 0x4, offset = 0x4, fixed_abs, tag = 'smem constant byte address 0x4 - core index']
  #allocation1 [shape = 'u32[144,128]{1,0:T(1,128)}', space=vmem, size = 0x12000, scoped, tag = 'internal scratch']
  %s0 = inlined_call_operand.hbm [shape: f32[2,4,16,16], index: 0, kind: input, shape index: {}]
  %s1 = inlined_call_operand.hbm [shape: f32[2,4,16,16], index: 1, kind: input, shape index: {}]
  %s2 = inlined_call_operand.hbm [shape: f32[2,4,16], index: 2, kind: output, shape index: {0}]
  %s3 = inlined_call_operand.hbm [shape: f32[2,4,16], index: 3, kind: output, shape index: {1}]
  %4 = xla_tuple %s2, %s3
  %s5 = sld [smem:[#allocation0]]
  $region61: #{tpu_custom_call.1} parent=0
    _
  %s7 = ssub.s32 1, %s5
  %s8 = scalar_select 0, %s7, %s5
  $region1: #{tpu_custom_call.1} parent=0
    #allocation2 [shape = 'u8[65536]{0}', space=vmem, size = 0x10000, scoped, tag = 'input window, operand 0']
    #allocation3 [shape = 's32[2]{0}', space=sflag, size = 0x8, scoped, tag = 'scoped memory for tpu_custom_call.1']
    #allocation4 [shape = 's32[2]{0}', space=sflag, size = 0x8, scoped, tag = 'scoped memory for tpu_custom_call.1']
    #allocation5 [shape = 'u8[65536]{0}', space=vmem, size = 0x10000, scoped, tag = 'input window, operand 1']
    #allocation6 [shape = 's32[2]{0}', space=sflag, size = 0x8, scoped, tag = 'scoped memory for tpu_custom_call.1']
    #allocation7 [shape = 'u8[4096]{0}', space=vmem, size = 0x1000, scoped, tag = 'output window, operand 0']
    #allocation8 [shape = 'u8[4096]{0}', space=vmem, size = 0x1000, scoped, tag = 'output window, operand 1']
    #allocation9 [shape = 's32[2]{0}', space=sflag, size = 0x8, scoped, tag = 'scoped memory for tpu_custom_call.1']
    %9 = vsyncpa [#allocation3], 0
    %s10 = scalar_lea.sflag [#allocation3], 1
    %11 = vsyncpa %s10, 0
    %12 = vsyncpa [#allocation6], 0
    %s13 = scalar_lea.sflag [#allocation6], 1
    %14 = vsyncpa %s13, 0
    %15 = vsyncpa [#allocation4], 0
    %s16 = scalar_lea.sflag [#allocation4], 1
    %17 = vsyncpa %s16, 0
    %18 = vsyncpa [#allocation9], 0
    %s19 = scalar_lea.sflag [#allocation9], 1
    %20 = vsyncpa %s19, 0
    loop: start=0, step=1, limit=4
    $region2: #{tpu_custom_call.1} parent=1 // loop_pre_header
      _
    $region3: #{tpu_custom_call.1} parent=1 // loop_header
      %s22 = sphi 0, %s26
      %p23 = scmp.ge.s32.totalorder %s22, 4
      %s29 = sphi 0, %s55
      %s30 = sphi 0, %s51
      %s31 = sphi 0, %s47
      %s32 = sphi 0, %s43
      %s33 = sphi 0, %s29
      %s34 = sphi 0, %s30
      %s35 = sphi 0, %s31
      %s36 = sphi 0, %s32
      %s37 = sphi 0, %s33
      %s38 = sphi 0, %s34
      %s39 = sphi 0, %s35
      %s40 = sphi 0, %s36
      %s64 = sphi 0, %s66
      %s67 = sphi 0, %s64
      %s68 = sphi 0, %s67
      %s84 = sphi 0, %s68
      %s96 = sphi 0, %s98
      %s99 = sphi 0, %s96
      %s100 = sphi 0, %s99
      %s116 = sphi 0, %s100
      %s126 = sphi 0, %s128
      %s129 = sphi 0, %s126
      %s130 = sphi 0, %s129
      %s146 = sphi 0, %s130
      %s156 = sphi 0, %s158
      %s159 = sphi 0, %s156
      %s160 = sphi 0, %s159
      %s176 = sphi 0, %s160
    $region4: #{tpu_custom_call.1} parent=1 // loop_header_branch
      %25 = sbr.rel (%p23) target = $region8
    $region5: #{tpu_custom_call.1} parent=1 // loop_body
      %s27 = ssub.s32 %s22, 1
      %s28 = ssub.s32 %s22, 2
      %s41 = sadd.s32 1, %s32
      %p42 = scmp.ge.s32.totalorder %s41, 1
      %s43 = scalar_select %p42, 0, %s41
      %s44 = sadd.s32 1, %s31
      %s45 = scalar_select %p42, %s44, %s31
      %p46 = scmp.ge.s32.totalorder %s45, 1
      %s47 = scalar_select %p46, 0, %s45
      %s48 = sadd.s32 1, %s30
      %s49 = scalar_select %p46, %s48, %s30
      %p50 = scmp.ge.s32.totalorder %s49, 1
      %s51 = scalar_select %p50, 0, %s49
      %s52 = sadd.s32 1, %s29
      %s53 = scalar_select %p50, %s52, %s29
      %p54 = scmp.ge.s32.totalorder %s53, 2
      %s55 = scalar_select %p54, 0, %s53
      %s56 = ssub.s32 %s29, %s55
      %s57 = ssub.s32 %s30, %s51
      %s58 = sor.u32 %s56, %s57
      %s59 = ssub.s32 %s32, %s43
      %s60 = sor.u32 %s58, %s59
      %s61 = ssub.s32 %s31, %s47
      %s62 = sor.u32 %s60, %s61
      %p63 = scmp.eq.s32.totalorder %s62, 0
      %s65 = sadd.s32 %s64, 1
      %s66 = scalar_select %p63, %s64, %s65
      %p69 = pneg %p63
      %p70 = scmp.eq.s32.totalorder %s22, 1
      %p71 = por %p69, %p70
      %p72 = scmp.ne.s32.totalorder %s64, %s67
      %p73 = scmp.eq.s32.totalorder %s22, 0
      %p74 = por %p72, %p73
      %p75 = scmp.ne.s32.totalorder %s64, %s67
      %p76 = scmp.eq.s32.totalorder %s27, 1
      %p77 = por %p75, %p76
      %p78 = scmp.ne.s32.totalorder %s67, %s68
      %p79 = scmp.eq.s32.totalorder %s27, 0
      %p80 = por %p78, %p79
      %p81 = scmp.ne.s32.totalorder %s67, %s68
      %p82 = scmp.eq.s32.totalorder %s28, 1
      %p83 = por %p81, %p82
      %p85 = scmp.ne.s32.totalorder %s68, %s84
      %p86 = scmp.eq.s32.totalorder %s28, 0
      %p87 = por %p85, %p86
      %s88 = ssub.s32 %s29, %s55
      %s89 = ssub.s32 %s30, %s51
      %s90 = sor.u32 %s88, %s89
      %s91 = ssub.s32 %s32, %s43
      %s92 = sor.u32 %s90, %s91
      %s93 = ssub.s32 %s31, %s47
      %s94 = sor.u32 %s92, %s93
      %p95 = scmp.eq.s32.totalorder %s94, 0
      %s97 = sadd.s32 %s96, 1
      %s98 = scalar_select %p95, %s96, %s97
      %p101 = pneg %p95
      %p102 = scmp.eq.s32.totalorder %s22, 1
      %p103 = por %p101, %p102
      %p104 = scmp.ne.s32.totalorder %s96, %s99
      %p105 = scmp.eq.s32.totalorder %s22, 0
      %p106 = por %p104, %p105
      %p107 = scmp.ne.s32.totalorder %s96, %s99
      %p108 = scmp.eq.s32.totalorder %s27, 1
      %p109 = por %p107, %p108
      %p110 = scmp.ne.s32.totalorder %s99, %s100
      %p111 = scmp.eq.s32.totalorder %s27, 0
      %p112 = por %p110, %p111
      %p113 = scmp.ne.s32.totalorder %s99, %s100
      %p114 = scmp.eq.s32.totalorder %s28, 1
      %p115 = por %p113, %p114
      %p117 = scmp.ne.s32.totalorder %s100, %s116
      %p118 = scmp.eq.s32.totalorder %s28, 0
      %p119 = por %p117, %p118
      %s120 = ssub.s32 %s29, %s55
      %s121 = ssub.s32 %s30, %s51
      %s122 = sor.u32 %s120, %s121
      %s123 = ssub.s32 %s31, %s47
      %s124 = sor.u32 %s122, %s123
      %p125 = scmp.eq.s32.totalorder %s124, 0
      %s127 = sadd.s32 %s126, 1
      %s128 = scalar_select %p125, %s126, %s127
      %p131 = pneg %p125
      %p132 = scmp.eq.s32.totalorder %s22, 1
      %p133 = por %p131, %p132
      %p134 = scmp.ne.s32.totalorder %s126, %s129
      %p135 = scmp.eq.s32.totalorder %s22, 0
      %p136 = por %p134, %p135
      %p137 = scmp.ne.s32.totalorder %s126, %s129
      %p138 = scmp.eq.s32.totalorder %s27, 1
      %p139 = por %p137, %p138
      %p140 = scmp.ne.s32.totalorder %s129, %s130
      %p141 = scmp.eq.s32.totalorder %s27, 0
      %p142 = por %p140, %p141
      %p143 = scmp.ne.s32.totalorder %s129, %s130
      %p144 = scmp.eq.s32.totalorder %s28, 1
      %p145 = por %p143, %p144
      %p147 = scmp.ne.s32.totalorder %s130, %s146
      %p148 = scmp.eq.s32.totalorder %s28, 0
      %p149 = por %p147, %p148
      %s150 = ssub.s32 %s29, %s55
      %s151 = ssub.s32 %s30, %s51
      %s152 = sor.u32 %s150, %s151
      %s153 = ssub.s32 %s31, %s47
      %s154 = sor.u32 %s152, %s153
      %p155 = scmp.eq.s32.totalorder %s154, 0
      %s157 = sadd.s32 %s156, 1
      %s158 = scalar_select %p155, %s156, %s157
      %p161 = pneg %p155
      %p162 = scmp.eq.s32.totalorder %s22, 1
      %p163 = por %p161, %p162
      %p164 = scmp.ne.s32.totalorder %s156, %s159
      %p165 = scmp.eq.s32.totalorder %s22, 0
      %p166 = por %p164, %p165
      %p167 = scmp.ne.s32.totalorder %s156, %s159
      %p168 = scmp.eq.s32.totalorder %s27, 1
      %p169 = por %p167, %p168
      %p170 = scmp.ne.s32.totalorder %s159, %s160
      %p171 = scmp.eq.s32.totalorder %s27, 0
      %p172 = por %p170, %p171
      %p173 = scmp.ne.s32.totalorder %s159, %s160
      %p174 = scmp.eq.s32.totalorder %s28, 1
      %p175 = por %p173, %p174
      %p177 = scmp.ne.s32.totalorder %s160, %s176
      %p178 = scmp.eq.s32.totalorder %s28, 0
      %p179 = por %p177, %p178
      %p180 = scmp.le.s32.totalorder 1, %s22
      %p181 = scmp.lt.s32.totalorder %s22, 3
      %p182 = pnand %p180, %p181
      %p183 = pneg %p182
      // Predicated region
      $region9: #{tpu_custom_call.1} parent=5 // pred_check
        _
      $region10: #{tpu_custom_call.1} parent=5 // pred_check_branch
        %185 = sbr.rel (%p182) target = $region12
      $region11: #{tpu_custom_call.1} parent=5 // pred_region
        %s186 = ssub.s32 %s22, 1
      $region12: #{tpu_custom_call.1} parent=5 // pred_fallthru
        _
      %p187 = scmp.lt.s32.totalorder %s22, 2
      // Predicated region
      $region13: #{tpu_custom_call.1} parent=5 // pred_check
        %p188 = pneg %p187
      $region14: #{tpu_custom_call.1} parent=5 // pred_check_branch
        %190 = sbr.rel (%p188) target = $region16
      $region15: #{tpu_custom_call.1} parent=5 // pred_region
        // Predicated region
        $region17: #{tpu_custom_call.1} parent=15 // pred_check
          %p191 = pneg %p74
        $region18: #{tpu_custom_call.1} parent=15 // pred_check_branch
          %193 = sbr.rel (%p191) target = $region20
        $region19: #{tpu_custom_call.1} parent=15 // pred_region
          %s194 = sand.u32 %s64, 1
          %s195 = scalar_lea.sflag [#allocation3], %s194
          %s196 = sand.u32 %s64, 1
          %s197 = smul.addr %s196, 64
          %s198 = scalar_lea.vmem [#allocation2], %s197
          %s199 = smul.u32 4, %s30
          %s200 = smul.u32 2, %s32
          %s202 = ssub.s32 1024, 1024
          %203 = vsyncadd %s195, %s202
          %s204 = sadd.s32 %s31, %s200
          %s205 = smul.addr %s199, 2
          %s206 = sadd.s32 %s204, %s205
          %s207 = smul.addr %s29, 8
          %s208 = sadd.s32 %s206, %s207
          %s209 = smul.addr %s208, 128
          %s210 = scalar_lea.hbm %s0, %s209
          %s211 = sshll.u32 %s198, 4
          %s212 = int_to_ptr.vmem [resolvable:$true] %s211
          %217 = dma.hbm_to_vmem [thread:$0]  %s210, 1024, %s212, %s195, 128, 128, 8
        $region20: #{tpu_custom_call.1} parent=15 // pred_fallthru
          _
        // Predicated region
        $region21: #{tpu_custom_call.1} parent=15 // pred_check
          %p218 = pneg %p106
        $region22: #{tpu_custom_call.1} parent=15 // pred_check_branch
          %220 = sbr.rel (%p218) target = $region24
        $region23: #{tpu_custom_call.1} parent=15 // pred_region
          %s221 = sand.u32 %s96, 1
          %s222 = scalar_lea.sflag [#allocation6], %s221
          %s223 = sand.u32 %s96, 1
          %s224 = smul.addr %s223, 64
          %s225 = scalar_lea.vmem [#allocation5], %s224
          %s226 = smul.u32 4, %s30
          %s227 = smul.u32 2, %s32
          %s229 = ssub.s32 1024, 1024
          %230 = vsyncadd %s222, %s229
          %s231 = sadd.s32 %s31, %s227
          %s232 = smul.addr %s226, 2
          %s233 = sadd.s32 %s231, %s232
          %s234 = smul.addr %s29, 8
          %s235 = sadd.s32 %s233, %s234
          %s236 = smul.addr %s235, 128
          %s237 = scalar_lea.hbm %s1, %s236
          %s238 = sshll.u32 %s225, 4
          %s239 = int_to_ptr.vmem [resolvable:$true] %s238
          %244 = dma.hbm_to_vmem [thread:$0]  %s237, 1024, %s239, %s222, 128, 128, 8
        $region24: #{tpu_custom_call.1} parent=15 // pred_fallthru
          _
      $region16: #{tpu_custom_call.1} parent=5 // pred_fallthru
        _
      %p245 = scmp.le.s32.totalorder 1, %s22
      %p246 = scmp.lt.s32.totalorder %s22, 3
      %p247 = pnand %p245, %p246
      %p248 = pneg %p247
      // Predicated region
      $region25: #{tpu_custom_call.1} parent=5 // pred_check
        _
      $region26: #{tpu_custom_call.1} parent=5 // pred_check_branch
        %250 = sbr.rel (%p247) target = $region28
      $region27: #{tpu_custom_call.1} parent=5 // pred_region
        %s251 = ssub.s32 %s22, 1
        %s252 = sand.u32 %s67, 1
        %s253 = scalar_lea.sflag [#allocation3], %s252
        %s254 = sand.u32 %s67, 1
        %s255 = smul.addr %s254, 64
        %s256 = scalar_lea.vmem [#allocation2], %s255
        // Predicated region
        $region29: #{tpu_custom_call.1} parent=27 // pred_check
          %p257 = pneg %p80
        $region30: #{tpu_custom_call.1} parent=27 // pred_check_branch
          %259 = sbr.rel (%p257) target = $region32
        $region31: #{tpu_custom_call.1} parent=27 // pred_region
          %260 = dma.done %s253, 1024
        $region32: #{tpu_custom_call.1} parent=27 // pred_fallthru
          _
        %s261 = sand.u32 %s99, 1
        %s262 = scalar_lea.sflag [#allocation6], %s261
        %s263 = sand.u32 %s99, 1
        %s264 = smul.addr %s263, 64
        %s265 = scalar_lea.vmem [#allocation5], %s264
        // Predicated region
        $region33: #{tpu_custom_call.1} parent=27 // pred_check
          %p266 = pneg %p112
        $region34: #{tpu_custom_call.1} parent=27 // pred_check_branch
          %268 = sbr.rel (%p266) target = $region36
        $region35: #{tpu_custom_call.1} parent=27 // pred_region
          %269 = dma.done %s262, 1024
        $region36: #{tpu_custom_call.1} parent=27 // pred_fallthru
          _
        %s270 = sand.u32 %s67, 1
        %s271 = scalar_lea.sflag [#allocation3], %s270
        %s272 = sand.u32 %s67, 1
        %s273 = smul.addr %s272, 64
        %s274 = scalar_lea.vmem [#allocation2], %s273
        %p275 = pneg %p80
        %p276 = pneg %p77
        %s277 = sand.u32 %s99, 1
        %s278 = scalar_lea.sflag [#allocation6], %s277
        %s279 = sand.u32 %s99, 1
        %s280 = smul.addr %s279, 64
        %s281 = scalar_lea.vmem [#allocation5], %s280
        %p282 = pneg %p112
        %p283 = pneg %p109
        %p284 = pneg %p142
        %p285 = pneg %p139
        %s286 = sand.u32 %s129, 1
        %s287 = scalar_lea.sflag [#allocation4], %s286
        %s288 = sand.u32 %s129, 1
        %s289 = smul.addr %s288, 4
        %s290 = scalar_lea.vmem [#allocation7], %s289
        %p291 = pneg %p172
        %p292 = pneg %p169
        %s293 = sand.u32 %s159, 1
        %s294 = scalar_lea.sflag [#allocation9], %s293
        %s295 = sand.u32 %s159, 1
        %s296 = smul.addr %s295, 4
        %s297 = scalar_lea.vmem [#allocation8], %s296
        %s298 = smul.u32 4, %s34
        %s299 = smul.u32 2, %s36
        %s300 = smul.u32 4, %s34
        %s301 = smul.u32 2, %s36
        %p302 = scmp.eq.s32.totalorder %s36, 0
        // Predicated region
        $region37: #{tpu_custom_call.1} parent=27 // pred_check
          %p303 = pneg %p302
        $region38: #{tpu_custom_call.1} parent=27 // pred_check_branch
          %305 = sbr.rel (%p303) target = $region40
        $region39: #{tpu_custom_call.1} parent=27 // pred_region
          %vm306 = vcmask 125952
          %307 = vst.msk [vmem:[%s290] sm:$0xf] %vm306, 0.0
          %308 = vst.msk [vmem:[%s297] sm:$0xf] %vm306, 0.0
        $region40: #{tpu_custom_call.1} parent=27 // pred_fallthru
          _
        %v309 = vld [vmem:[%s256] sm:$0xff]
        %v310 = vld [vmem:[%s256 + $0x8] sm:$0xff]
        %v311 = vld [vmem:[%s256 + $0x10] sm:$0xff]
        %v312 = vld [vmem:[%s256 + $0x18] sm:$0xff]
        %v313 = vld [vmem:[%s256 + $0x20] sm:$0xff]
        %v314 = vld [vmem:[%s256 + $0x28] sm:$0xff]
        %v315 = vld [vmem:[%s256 + $0x30] sm:$0xff]
        %v316 = vld [vmem:[%s256 + $0x38] sm:$0xff]
        %v317 = vld [vmem:[%s265] sm:$0xff]
        %v318 = vld [vmem:[%s265 + $0x8] sm:$0xff]
        %v319 = vld [vmem:[%s265 + $0x10] sm:$0xff]
        %v320 = vld [vmem:[%s265 + $0x18] sm:$0xff]
        %v321 = vld [vmem:[%s265 + $0x20] sm:$0xff]
        %v322 = vld [vmem:[%s265 + $0x28] sm:$0xff]
        %v323 = vld [vmem:[%s265 + $0x30] sm:$0xff]
        %v324 = vld [vmem:[%s265 + $0x38] sm:$0xff]
        %v325 = vsub.f32 %v309, %v317
        %v326 = vsub.f32 %v310, %v318
        %v327 = vsub.f32 %v311, %v319
        %v328 = vsub.f32 %v312, %v320
        %v329 = vsub.f32 %v313, %v321
        %v330 = vsub.f32 %v314, %v322
        %v331 = vsub.f32 %v315, %v323
        %v332 = vsub.f32 %v316, %v324
        %v333 = vand.u32 2147483647, %v325
        %v334 = vand.u32 2147483647, %v326
        %v335 = vand.u32 2147483647, %v327
        %v336 = vand.u32 2147483647, %v328
        %v337 = vand.u32 2147483647, %v329
        %v338 = vand.u32 2147483647, %v330
        %v339 = vand.u32 2147483647, %v331
        %v340 = vand.u32 2147483647, %v332
        %v341 = vld [vmem:[%s290] sm:$0xf]
        %vm342 = vcmask 130048
        %v343 = vsel %vm342, %v333, 0.0
        %v344 = vsel %vm342, %v334, 0.0
        %v345 = vadd.f32 %v343, %v344
        %v346 = vrot.slane %v345, 4
        %v347 = vadd.f32 %v345, %v346
        %v348 = vrot.slane %v347, 2
        %v349 = vadd.f32 %v347, %v348
        %v350 = vrot.slane %v349, 1
        %v351 = vadd.f32 %v349, %v350
        %v352 = vsel %vm342, %v335, 0.0
        %v353 = vsel %vm342, %v336, 0.0
        %v354 = vadd.f32 %v352, %v353
        %v355 = vrot.slane %v354, 4
        %v356 = vadd.f32 %v354, %v355
        %v357 = vrot.slane %v356, 2
        %v358 = vadd.f32 %v356, %v357
        %v359 = vrot.slane %v358, 1
        %v360 = vadd.f32 %v358, %v359
        %v361 = vsel %vm342, %v337, 0.0
        %v362 = vsel %vm342, %v338, 0.0
        %v363 = vadd.f32 %v361, %v362
        %v364 = vrot.slane %v363, 4
        %v365 = vadd.f32 %v363, %v364
        %v366 = vrot.slane %v365, 2
        %v367 = vadd.f32 %v365, %v366
        %v368 = vrot.slane %v367, 1
        %v369 = vadd.f32 %v367, %v368
        %v370 = vsel %vm342, %v339, 0.0
        %v371 = vsel %vm342, %v340, 0.0
        %v372 = vadd.f32 %v370, %v371
        %v373 = vrot.slane %v372, 4
        %v374 = vadd.f32 %v372, %v373
        %v375 = vrot.slane %v374, 2
        %v376 = vadd.f32 %v374, %v375
        %v377 = vrot.slane %v376, 1
        %v378 = vadd.f32 %v376, %v377
        %vm383 = vcmask 1041409
        %v384 = vsel %vm383, %v360, %v351
        %vm385 = vcmask 1042434
        %v386 = vsel %vm385, %v369, %v384
        %vm387 = vcmask 1043459
        %v388 = vsel %vm387, %v378, %v386
        %v390 = vadd.f32 %v341, %v388
        %vm391 = vcmask 125952
        %392 = vst.msk [vmem:[%s290] sm:$0xf] %vm391, %v390
        %v393 = vld [vmem:[%s297] sm:$0xf]
        %v394 = vmul.f32 %v333, %v333
        %v395 = vmul.f32 %v334, %v334
        %v396 = vmul.f32 %v335, %v335
        %v397 = vmul.f32 %v336, %v336
        %v398 = vmul.f32 %v337, %v337
        %v399 = vmul.f32 %v338, %v338
        %v400 = vmul.f32 %v339, %v339
        %v401 = vmul.f32 %v340, %v340
        %v402 = vsel %vm342, %v394, 0.0
        %v403 = vsel %vm342, %v395, 0.0
        %v404 = vadd.f32 %v402, %v403
        %v405 = vrot.slane %v404, 4
        %v406 = vadd.f32 %v404, %v405
        %v407 = vrot.slane %v406, 2
        %v408 = vadd.f32 %v406, %v407
        %v409 = vrot.slane %v408, 1
        %v410 = vadd.f32 %v408, %v409
        %v411 = vsel %vm342, %v396, 0.0
        %v412 = vsel %vm342, %v397, 0.0
        %v413 = vadd.f32 %v411, %v412
        %v414 = vrot.slane %v413, 4
        %v415 = vadd.f32 %v413, %v414
        %v416 = vrot.slane %v415, 2
        %v417 = vadd.f32 %v415, %v416
        %v418 = vrot.slane %v417, 1
        %v419 = vadd.f32 %v417, %v418
        %v420 = vsel %vm342, %v398, 0.0
        %v421 = vsel %vm342, %v399, 0.0
        %v422 = vadd.f32 %v420, %v421
        %v423 = vrot.slane %v422, 4
        %v424 = vadd.f32 %v422, %v423
        %v425 = vrot.slane %v424, 2
        %v426 = vadd.f32 %v424, %v425
        %v427 = vrot.slane %v426, 1
        %v428 = vadd.f32 %v426, %v427
        %v429 = vsel %vm342, %v400, 0.0
        %v430 = vsel %vm342, %v401, 0.0
        %v431 = vadd.f32 %v429, %v430
        %v432 = vrot.slane %v431, 4
        %v433 = vadd.f32 %v431, %v432
        %v434 = vrot.slane %v433, 2
        %v435 = vadd.f32 %v433, %v434
        %v436 = vrot.slane %v435, 1
        %v437 = vadd.f32 %v435, %v436
        %v442 = vsel %vm383, %v419, %v410
        %v443 = vsel %vm385, %v428, %v442
        %v444 = vsel %vm387, %v437, %v443
        %v446 = vadd.f32 %v393, %v444
        %447 = vst.msk [vmem:[%s297] sm:$0xf] %vm391, %v446
        %s448 = sand.u32 %s129, 1
        %s449 = scalar_lea.sflag [#allocation4], %s448
        %s450 = sand.u32 %s129, 1
        %s451 = smul.addr %s450, 4
        %s452 = scalar_lea.vmem [#allocation7], %s451
        %s453 = sand.u32 %s159, 1
        %s454 = scalar_lea.sflag [#allocation9], %s453
        %s455 = sand.u32 %s159, 1
        %s456 = smul.addr %s455, 4
        %s457 = scalar_lea.vmem [#allocation8], %s456
        // Predicated region
        $region41: #{tpu_custom_call.1} parent=27 // pred_check
          %p458 = pneg %p139
        $region42: #{tpu_custom_call.1} parent=27 // pred_check_branch
          %460 = sbr.rel (%p458) target = $region44
        $region43: #{tpu_custom_call.1} parent=27 // pred_region
          %s462 = ssub.s32 64, 64
          %463 = vsyncadd %s449, %s462
          %s464 = sadd.s32 %s35, %s34
          %s465 = sadd.s32 %s464, %s33
          %s466 = smul.addr %s465, 64
          %s467 = scalar_lea.hbm %s2, %s466
          %s469 = sshll.u32 %s452, 4
          %s470 = int_to_ptr.vmem [resolvable:$true] %s469
          %472 = dma.vmem_to_hbm [thread:$0]  %s470, 64, %s467, %s449
        $region44: #{tpu_custom_call.1} parent=27 // pred_fallthru
          _
        // Predicated region
        $region45: #{tpu_custom_call.1} parent=27 // pred_check
          %p473 = pneg %p169
        $region46: #{tpu_custom_call.1} parent=27 // pred_check_branch
          %475 = sbr.rel (%p473) target = $region48
        $region47: #{tpu_custom_call.1} parent=27 // pred_region
          %s477 = ssub.s32 64, 64
          %478 = vsyncadd %s454, %s477
          %s479 = sadd.s32 %s35, %s34
          %s480 = sadd.s32 %s479, %s33
          %s481 = smul.addr %s480, 64
          %s482 = scalar_lea.hbm %s3, %s481
          %s484 = sshll.u32 %s457, 4
          %s485 = int_to_ptr.vmem [resolvable:$true] %s484
          %487 = dma.vmem_to_hbm [thread:$0]  %s485, 64, %s482, %s454
        $region48: #{tpu_custom_call.1} parent=27 // pred_fallthru
          _
      $region28: #{tpu_custom_call.1} parent=5 // pred_fallthru
        _
      %p488 = scmp.le.s32.totalorder 2, %s22
      // Predicated region
      $region49: #{tpu_custom_call.1} parent=5 // pred_check
        %p489 = pneg %p488
      $region50: #{tpu_custom_call.1} parent=5 // pred_check_branch
        %491 = sbr.rel (%p489) target = $region52
      $region51: #{tpu_custom_call.1} parent=5 // pred_region
        %s492 = ssub.s32 %s22, 2
        // Predicated region
        $region53: #{tpu_custom_call.1} parent=51 // pred_check
          %p493 = pneg %p145
        $region54: #{tpu_custom_call.1} parent=51 // pred_check_branch
          %495 = sbr.rel (%p493) target = $region56
        $region55: #{tpu_custom_call.1} parent=51 // pred_region
          %s496 = sand.u32 %s130, 1
          %s497 = scalar_lea.sflag [#allocation4], %s496
          %s498 = sand.u32 %s130, 1
          %s499 = smul.addr %s498, 4
          %s500 = scalar_lea.vmem [#allocation7], %s499
          %501 = dma.done %s497, 64
        $region56: #{tpu_custom_call.1} parent=51 // pred_fallthru
          _
        // Predicated region
        $region57: #{tpu_custom_call.1} parent=51 // pred_check
          %p502 = pneg %p175
        $region58: #{tpu_custom_call.1} parent=51 // pred_check_branch
          %504 = sbr.rel (%p502) target = $region60
        $region59: #{tpu_custom_call.1} parent=51 // pred_region
          %s505 = sand.u32 %s160, 1
          %s506 = scalar_lea.sflag [#allocation9], %s505
          %s507 = sand.u32 %s160, 1
          %s508 = smul.addr %s507, 4
          %s509 = scalar_lea.vmem [#allocation8], %s508
          %510 = dma.done %s506, 64
        $region60: #{tpu_custom_call.1} parent=51 // pred_fallthru
          _
      $region52: #{tpu_custom_call.1} parent=5 // pred_fallthru
        _
    $region6: #{tpu_custom_call.1} parent=1 // loop_footer
      %s26 = sadd.s32 1, %s22
    $region7: #{tpu_custom_call.1} parent=1 // loop_footer_branch
      %21 = sbr.rel target = $region3
    $region8: #{tpu_custom_call.1} parent=1 // loop_exit
      _
    %511 = vsyncpa [#allocation3], 1
    %s512 = scalar_lea.sflag [#allocation3], 1
    %513 = vsyncpa %s512, 1
    %514 = vsyncpa [#allocation6], 1
    %s515 = scalar_lea.sflag [#allocation6], 1
    %516 = vsyncpa %s515, 1
    %517 = vsyncpa [#allocation4], 1
    %s518 = scalar_lea.sflag [#allocation4], 1
    %519 = vsyncpa %s518, 1
    %520 = vsyncpa [#allocation9], 1
    %s521 = scalar_lea.sflag [#allocation9], 1
    %522 = vsyncpa %s521, 1

</llo_original>
